<compile_context>
chip_gen: v6e
topology: v6e:2x2x1
jax: 0.10.0
libtpu: 0.0.40
codegen_flags: <defaults>
</compile_context>

<pallas_src>
import functools
import math

import jax
import jax.numpy as jnp
from jax.experimental import pallas as pl
from jax.experimental.pallas import tpu as pltpu

_LANES = 128


def _exact_seg_dot(a, seg):
    """Row-local segment-sum via MXU matmul, robust to bf16 operand truncation.

    `seg` is a 0/1 block-diagonal (128, 128) matrix (exact in bf16).  Splitting
    `a` into an exactly-bf16-representable hi part plus an f32 residual keeps
    the sums accurate to ~1e-6 even if the MXU truncates f32 operands; if the
    backend already runs an accurate f32 matmul the extra pass is cheap
    (MXU-idle) redundancy.
    """
    a_hi = a.astype(jnp.bfloat16).astype(jnp.float32)
    a_lo = a - a_hi
    return (jnp.dot(a_hi, seg, preferred_element_type=jnp.float32)
            + jnp.dot(a_lo, seg, preferred_element_type=jnp.float32))


def _layernorm_kernel(x_ref, gamma_ref, beta_ref, o_ref, *, eps, n_features):
    """Standard path: one row per sublane row, features on the lane axis."""
    x = x_ref[...].astype(jnp.float32)                          # (TM, F)
    f = jnp.float32(n_features)
    # Two-pass moments: exact lane reductions, no cancellation risk; the extra
    # (TM, F) VPU pass is hidden under HBM in this memory-bound kernel.
    mean = jnp.sum(x, axis=-1, keepdims=True) / f               # (TM, 1)
    d = x - mean
    var = jnp.sum(d * d, axis=-1, keepdims=True) / (f - 1.0)    # unbiased (torch .std)
    inv = 1.0 / (jnp.sqrt(var) + eps)                           # eps on std (module)
    y = d * inv * gamma_ref[...].astype(jnp.float32) + beta_ref[...].astype(jnp.float32)
    o_ref[...] = y.astype(o_ref.dtype)


def _layernorm_folded_kernel(x_ref, gamma_ref, beta_ref, seg_ref, o_ref, *,
                             eps, n_features):
    """Lane-dense path for n_features < 128: k = 128 // F original rows folded
    into the 128-lane axis; per-row reductions become segment sums on the MXU,
    already broadcast back per lane."""
    x = x_ref[...].astype(jnp.float32)                          # (TM, 128)
    seg = seg_ref[...]                                          # (128, 128) 0/1
    f = jnp.float32(n_features)
    mean = _exact_seg_dot(x, seg) / f                           # const per segment
    d = x - mean
    var = _exact_seg_dot(d * d, seg) / (f - 1.0)
    inv = 1.0 / (jnp.sqrt(var) + eps)
    y = d * inv * gamma_ref[...].astype(jnp.float32) + beta_ref[...].astype(jnp.float32)
    o_ref[...] = y.astype(o_ref.dtype)


def _default_vmem_limit() -> int:
    """~half of reported VMEM (v5e/v6e: 128 MiB -> 64 MiB; v7x: 64 MiB/TC -> 32 MiB),
    capped at 96 MiB; conservative 48 MiB when the query is unavailable."""
    try:
        cap = int(pltpu.get_tpu_info().vmem_capacity_bytes)
        return max(min(cap // 2, 96 << 20), 16 << 20)
    except Exception:
        return 48 << 20


def _choose_row_tile(rows: int, f_eff: int, itemsize: int, budget_bytes: int) -> int:
    # VMEM per tile row: double-buffered input + output tiles plus ~3 live f32
    # (TM, F) temporaries inside the kernel (x_f32 / d / y).
    per_row = f_eff * (4 * itemsize + 12)
    tm = budget_bytes // max(per_row, 1)
    tm = max(min(tm, 8192), 8)
    tm = (tm // 16) * 16 if tm >= 16 else 8      # sublane packing (16 rows for bf16)
    if rows <= tm:
        return rows                               # single full-extent block (always legal)
    return tm


def _grid_semantics(num_blocks: int):
    # Split the row grid across TensorCores when a multi-core chip (v7x) is
    # positively detected; plain "parallel" is safe/sufficient on v5e/v6e.
    try:
        info = pltpu.get_tpu_info()
        cores = 0
        for name in ("num_cores", "core_count", "num_tensorcores"):
            v = getattr(info, name, None)
            if v:
                cores = int(v)
                break
        if cores > 1 and num_blocks >= cores:
            return (pltpu.CORE_PARALLEL,)
    except Exception:
        pass
    return ("parallel",)


def layer_norm(x, gamma, beta, *, eps: float = 1e-6,
               vmem_limit_bytes=None, row_tile=None):
    """x: (..., n_features); gamma, beta: (n_features,).  Matches the PyTorch
    module: unbiased std over the last axis, eps added to std (not var)."""
    orig_shape = x.shape
    n_features = orig_shape[-1]
    if n_features < 2:
        raise ValueError("unbiased std (torch.Tensor.std) needs n_features >= 2")
    rows = math.prod(orig_shape[:-1]) if len(orig_shape) > 1 else 1

    if vmem_limit_bytes is None:
        vmem_limit_bytes = _default_vmem_limit()

    x2d = x.reshape(rows, n_features)
    gamma2d = gamma.reshape(1, n_features)
    beta2d = beta.reshape(1, n_features)

    # Lane-dense fold: pack k = 128 // F rows into the lane axis so loads/stores
    # run at full lane occupancy (unmasked vst).  The row-major reshape is free
    # (identical HBM layout) — no extra HBM pass.
    k = _LANES // n_features if n_features < _LANES else 1
    fold = (n_features < _LANES and _LANES % n_features == 0
            and n_features >= 16 and rows % k == 0)
    if fold:
        rows_eff, f_eff = rows // k, _LANES
        x2d = x2d.reshape(rows_eff, f_eff)
        gamma2d = jnp.tile(gamma2d, (1, k))
        beta2d = jnp.tile(beta2d, (1, k))
        lane_seg = jnp.arange(_LANES, dtype=jnp.int32) // n_features
        segmat = (lane_seg[:, None] == lane_seg[None, :]).astype(jnp.float32)
    else:
        rows_eff, f_eff = rows, n_features

    if row_tile is not None:
        tm = rows_eff if rows_eff <= row_tile else max((row_tile // 8) * 8, 8)
    else:
        tm = _choose_row_tile(rows_eff, f_eff, x.dtype.itemsize,
                              vmem_limit_bytes * 5 // 8)
    # Ragged last block is clipped by Pallas; LayerNorm is row-local, so the
    # overhanging rows are never written back (no jnp.pad / output slice).
    num_blocks = pl.cdiv(rows_eff, tm)

    in_specs = [
        pl.BlockSpec((tm, f_eff), lambda i: (i, 0)),
        pl.BlockSpec((1, f_eff), lambda i: (0, 0)),
        pl.BlockSpec((1, f_eff), lambda i: (0, 0)),
    ]
    args = [x2d, gamma2d, beta2d]
    if fold:
        in_specs.append(pl.BlockSpec((_LANES, _LANES), lambda i: (0, 0)))
        args.append(segmat)
        kernel = functools.partial(_layernorm_folded_kernel, eps=eps,
                                   n_features=n_features)
    else:
        kernel = functools.partial(_layernorm_kernel, eps=eps,
                                   n_features=n_features)

    out2d = pl.pallas_call(
        kernel,
        out_shape=jax.ShapeDtypeStruct((rows_eff, f_eff), x.dtype),
        grid_spec=pltpu.PrefetchScalarGridSpec(
            num_scalar_prefetch=0,
            grid=(num_blocks,),
            in_specs=in_specs,
            out_specs=pl.BlockSpec((tm, f_eff), lambda i: (i, 0)),
        ),
        compiler_params=pltpu.CompilerParams(
            dimension_semantics=_grid_semantics(num_blocks),
            vmem_limit_bytes=vmem_limit_bytes,
        ),
    )(*args)

    return out2d.reshape(orig_shape)


def _reference(x, gamma, beta, eps):
    n = x.shape[-1]
    mean = jnp.mean(x, axis=-1, keepdims=True)
    std = jnp.sqrt(jnp.sum((x - mean) ** 2, axis=-1, keepdims=True) / (n - 1))
    return gamma * (x - mean) / (std + eps) + beta


if __name__ == "__main__":
    key = jax.random.PRNGKey(0)
    k1, k2, k3, k4, k5 = jax.random.split(key, 5)

    # Shapes implied by the module's typical use (transformer sub-layer norm).
    batch, seq, hidden = 2, 8, 32
    x = jax.random.normal(k1, (batch, seq, hidden), dtype=jnp.float32)
    gamma = jnp.ones((hidden,), dtype=jnp.float32)    # module init: ones
    beta = jnp.zeros((hidden,), dtype=jnp.float32)    # module init: zeros

    out = layer_norm(x, gamma, beta, eps=1e-6)
    jax.block_until_ready(out)
    assert out.shape == x.shape
    assert jnp.allclose(out, _reference(x, gamma, beta, 1e-6),
                        atol=1e-4, rtol=1e-4), "mismatch (lane-dense folded path)"

    # Standard (F >= 128) path with a ragged last row-block (rows % tm != 0),
    # exercising the cdiv-grid clipping that replaced jnp.pad.
    x2 = jax.random.normal(k2, (40, 256), dtype=jnp.float32)
    g2 = 1.0 + 0.1 * jax.random.normal(k3, (256,), dtype=jnp.float32)
    b2 = 0.1 * jax.random.normal(k4, (256,), dtype=jnp.float32)
    out2 = layer_norm(x2, g2, b2, eps=1e-6, row_tile=16)
    jax.block_until_ready(out2)
    assert jnp.allclose(out2, _reference(x2, g2, b2, 1e-6),
                        atol=1e-4, rtol=1e-4), "mismatch (standard path, ragged grid)"

    # Folded path with a ragged last row-block.
    x3 = jax.random.normal(k5, (36, 32), dtype=jnp.float32)
    g3 = jnp.ones((32,), dtype=jnp.float32)
    b3 = jnp.zeros((32,), dtype=jnp.float32)
    out3 = layer_norm(x3, g3, b3, eps=1e-6, row_tile=8)
    jax.block_until_ready(out3)
    assert jnp.allclose(out3, _reference(x3, g3, b3, 1e-6),
                        atol=1e-4, rtol=1e-4), "mismatch (folded path, ragged grid)"

    print("KERNEL_OK")
</pallas_src>

<mosaic_0001>
module attributes {stable_mosaic.version = 11 : i64} {
  func.func @_layernorm_folded_kernel(%arg0: i32, %arg1: memref<4x128xf32, #tpu.memory_space<vmem>>, %arg2: memref<1x128xf32, #tpu.memory_space<vmem>>, %arg3: memref<1x128xf32, #tpu.memory_space<vmem>>, %arg4: memref<128x128xf32, #tpu.memory_space<vmem>>, %arg5: memref<4x128xf32, #tpu.memory_space<vmem>>) attributes {dimension_semantics = [#tpu.dimension_semantics<parallel>], iteration_bounds = array<i64: 1>, scalar_prefetch = 0 : i64, scratch_operands = 0 : i64, tpu.core_type = #tpu.core_type<tc>, window_params = [{transform_indices = @transform_0, window_bounds = array<i64: 4, 128>}, {pipeline_mode = #tpu.pipeline_mode<synchronous>, transform_indices = @transform_1, window_bounds = array<i64: 1, 128>}, {pipeline_mode = #tpu.pipeline_mode<synchronous>, transform_indices = @transform_2, window_bounds = array<i64: 1, 128>}, {pipeline_mode = #tpu.pipeline_mode<synchronous>, transform_indices = @transform_3, window_bounds = array<i64: 128, 128>}, {transform_indices = @transform_4, window_bounds = array<i64: 4, 128>}]} {
    %c0 = arith.constant 0 : index
    %c0_0 = arith.constant 0 : index
    %0 = vector.load %arg1[%c0, %c0_0] : memref<4x128xf32, #tpu.memory_space<vmem>>, vector<4x128xf32>
    %c0_1 = arith.constant 0 : index
    %c0_2 = arith.constant 0 : index
    %1 = vector.load %arg4[%c0_1, %c0_2] : memref<128x128xf32, #tpu.memory_space<vmem>>, vector<128x128xf32>
    %2 = arith.truncf %0 : vector<4x128xf32> to vector<4x128xbf16>
    %3 = arith.extf %2 : vector<4x128xbf16> to vector<4x128xf32>
    %4 = arith.subf %0, %3 : vector<4x128xf32>
    %cst = arith.constant dense<0.000000e+00> : vector<4x128xf32>
    %5 = tpu.matmul %3, %1, %cst {dimension_numbers = #tpu.dot_dimension_numbers<[1], [0], [0], [1], [0, 0, 1, 1], [], []>} : vector<4x128xf32>, vector<128x128xf32>, vector<4x128xf32> -> vector<4x128xf32>
    %cst_3 = arith.constant dense<0.000000e+00> : vector<4x128xf32>
    %6 = tpu.matmul %4, %1, %cst_3 {dimension_numbers = #tpu.dot_dimension_numbers<[1], [0], [0], [1], [0, 0, 1, 1], [], []>} : vector<4x128xf32>, vector<128x128xf32>, vector<4x128xf32> -> vector<4x128xf32>
    %7 = arith.addf %5, %6 : vector<4x128xf32>
    %cst_4 = arith.constant 3.200000e+01 : f32
    %8 = vector.broadcast %cst_4 : f32 to vector<4x128xf32>
    %9 = arith.divf %7, %8 : vector<4x128xf32>
    %10 = arith.subf %0, %9 : vector<4x128xf32>
    %11 = arith.mulf %10, %10 : vector<4x128xf32>
    %12 = arith.truncf %11 : vector<4x128xf32> to vector<4x128xbf16>
    %13 = arith.extf %12 : vector<4x128xbf16> to vector<4x128xf32>
    %14 = arith.subf %11, %13 : vector<4x128xf32>
    %cst_5 = arith.constant dense<0.000000e+00> : vector<4x128xf32>
    %15 = tpu.matmul %13, %1, %cst_5 {dimension_numbers = #tpu.dot_dimension_numbers<[1], [0], [0], [1], [0, 0, 1, 1], [], []>} : vector<4x128xf32>, vector<128x128xf32>, vector<4x128xf32> -> vector<4x128xf32>
    %cst_6 = arith.constant dense<0.000000e+00> : vector<4x128xf32>
    %16 = tpu.matmul %14, %1, %cst_6 {dimension_numbers = #tpu.dot_dimension_numbers<[1], [0], [0], [1], [0, 0, 1, 1], [], []>} : vector<4x128xf32>, vector<128x128xf32>, vector<4x128xf32> -> vector<4x128xf32>
    %17 = arith.addf %15, %16 : vector<4x128xf32>
    %cst_7 = arith.constant 3.200000e+01 : f32
    %cst_8 = arith.constant 1.000000e+00 : f32
    %18 = arith.subf %cst_7, %cst_8 : f32
    %19 = vector.broadcast %18 : f32 to vector<4x128xf32>
    %20 = arith.divf %17, %19 : vector<4x128xf32>
    %21 = math.sqrt %20 : vector<4x128xf32>
    %cst_9 = arith.constant 9.99999997E-7 : f32
    %22 = vector.broadcast %cst_9 : f32 to vector<4x128xf32>
    %23 = arith.addf %21, %22 : vector<4x128xf32>
    %cst_10 = arith.constant 1.000000e+00 : f32
    %24 = vector.broadcast %cst_10 : f32 to vector<4x128xf32>
    %25 = arith.divf %24, %23 : vector<4x128xf32>
    %26 = arith.mulf %10, %25 : vector<4x128xf32>
    %c0_11 = arith.constant 0 : index
    %c0_12 = arith.constant 0 : index
    %27 = vector.load %arg2[%c0_11, %c0_12] : memref<1x128xf32, #tpu.memory_space<vmem>>, vector<1x128xf32>
    %28 = vector.broadcast %27 : vector<1x128xf32> to vector<4x128xf32>
    %29 = arith.mulf %26, %28 : vector<4x128xf32>
    %c0_13 = arith.constant 0 : index
    %c0_14 = arith.constant 0 : index
    %30 = vector.load %arg3[%c0_13, %c0_14] : memref<1x128xf32, #tpu.memory_space<vmem>>, vector<1x128xf32>
    %31 = vector.broadcast %30 : vector<1x128xf32> to vector<4x128xf32>
    %32 = arith.addf %29, %31 : vector<4x128xf32>
    %c0_15 = arith.constant 0 : index
    %c0_16 = arith.constant 0 : index
    %33 = vector.load %arg5[%c0_15, %c0_16] : memref<4x128xf32, #tpu.memory_space<vmem>>, vector<4x128xf32>
    tpu.vector_store %arg5[%c0_15, %c0_16], %32 {strides = array<i32>} : memref<4x128xf32, #tpu.memory_space<vmem>>, vector<4x128xf32>,
    return
  }
  func.func @transform_0(%arg0: i32) -> (i32, i32) {
    %c0_i32 = arith.constant 0 : i32
    %c0_i32_0 = arith.constant 0 : i32
    return %arg0, %c0_i32 : i32, i32
  }
  func.func @transform_1(%arg0: i32) -> (i32, i32) {
    %c0_i32 = arith.constant 0 : i32
    %c0_i32_0 = arith.constant 0 : i32
    %c0_i32_1 = arith.constant 0 : i32
    return %c0_i32, %c0_i32_0 : i32, i32
  }
  func.func @transform_2(%arg0: i32) -> (i32, i32) {
    %c0_i32 = arith.constant 0 : i32
    %c0_i32_0 = arith.constant 0 : i32
    %c0_i32_1 = arith.constant 0 : i32
    return %c0_i32, %c0_i32_0 : i32, i32
  }
  func.func @transform_3(%arg0: i32) -> (i32, i32) {
    %c0_i32 = arith.constant 0 : i32
    %c0_i32_0 = arith.constant 0 : i32
    %c0_i32_1 = arith.constant 0 : i32
    return %c0_i32, %c0_i32_0 : i32, i32
  }
  func.func @transform_4(%arg0: i32) -> (i32, i32) {
    %c0_i32 = arith.constant 0 : i32
    %c0_i32_0 = arith.constant 0 : i32
    return %arg0, %c0_i32 : i32, i32
  }
}

</mosaic_0001>

<llo_original>
// kernel: tpu_custom_call.1
$region0: #{tpu_custom_call.1}
  #allocation0 [shape = 'u32[]', space=smem, size = 0x4, offset = 0x4, fixed_abs, tag = 'smem constant byte address 0x4 - core index']
  #allocation1 [shape = 'u32[144,128]{1,0:T(1,128)}', space=vmem, size = 0x12000, scoped, tag = 'internal scratch']
  %s0 = inlined_call_operand.hbm [shape: f32[4,128], index: 0, kind: input, shape index: {}]
  %s1 = inlined_call_operand.vmem [shape: f32[1,128], index: 1, kind: input, shape index: {}]
  %s2 = inlined_call_operand.vmem [shape: f32[1,128], index: 2, kind: input, shape index: {}]
  %s3 = inlined_call_operand.hbm [shape: f32[128,128], index: 3, kind: input, shape index: {}]
  %s4 = inlined_call_operand.hbm [shape: f32[4,128], index: 4, kind: output, shape index: {}]
  %s5 = sld [smem:[#allocation0]]
  $region34: #{tpu_custom_call.1} parent=0
    _
  %s7 = ssub.s32 1, %s5
  %s8 = scalar_select 0, %s7, %s5
  $region1: #{tpu_custom_call.1} parent=0
    #allocation2 [shape = 'u8[2048]{0}', space=vmem, size = 0x800, scoped, tag = 'input window, operand 0, single buffered']
    #allocation3 [shape = 's32[1]{0}', space=sflag, size = 0x4, scoped, tag = 'scoped memory for tpu_custom_call.1']
    #allocation4 [shape = 's32[1]{0}', space=sflag, size = 0x4, scoped, tag = 'scoped memory for tpu_custom_call.1']
    #allocation5 [shape = 'u8[65536]{0}', space=vmem, size = 0x10000, scoped, tag = 'input window, operand 3, single buffered']
    #allocation6 [shape = 's32[1]{0}', space=sflag, size = 0x4, scoped, tag = 'scoped memory for tpu_custom_call.1']
    #allocation7 [shape = 'u8[2048]{0}', space=vmem, size = 0x800, scoped, tag = 'output window, operand 0, single buffered']
    %9 = vsyncpa [#allocation3], 0
    %10 = vsyncpa [#allocation6], 0
    %11 = vsyncpa [#allocation4], 0
    // Predicated region
    $region2: #{tpu_custom_call.1} parent=1 // pred_check
      _
    $region3: #{tpu_custom_call.1} parent=1 // pred_check_branch
      %13 = sbr.rel (0) target = $region5
    $region4: #{tpu_custom_call.1} parent=1 // pred_region
      %s15 = ssub.s32 64, 64
      %16 = vsyncadd [#allocation3], %s15
      %s18 = sshll.u32 [#allocation2], 4
      %s19 = int_to_ptr.vmem [resolvable:$true] %s18
      %21 = dma.hbm_to_vmem [thread:$0]  %s0, 64, %s19, [#allocation3]
    $region5: #{tpu_custom_call.1} parent=1 // pred_fallthru
      _
    // Predicated region
    $region6: #{tpu_custom_call.1} parent=1 // pred_check
      _
    $region7: #{tpu_custom_call.1} parent=1 // pred_check_branch
      %23 = sbr.rel (0) target = $region9
    $region8: #{tpu_custom_call.1} parent=1 // pred_region
      _
    $region9: #{tpu_custom_call.1} parent=1 // pred_fallthru
      _
    // Predicated region
    $region10: #{tpu_custom_call.1} parent=1 // pred_check
      _
    $region11: #{tpu_custom_call.1} parent=1 // pred_check_branch
      %25 = sbr.rel (0) target = $region13
    $region12: #{tpu_custom_call.1} parent=1 // pred_region
      _
    $region13: #{tpu_custom_call.1} parent=1 // pred_fallthru
      _
    // Predicated region
    $region14: #{tpu_custom_call.1} parent=1 // pred_check
      _
    $region15: #{tpu_custom_call.1} parent=1 // pred_check_branch
      %27 = sbr.rel (0) target = $region17
    $region16: #{tpu_custom_call.1} parent=1 // pred_region
      %s29 = ssub.s32 2048, 2048
      %30 = vsyncadd [#allocation6], %s29
      %s31 = sshll.u32 [#allocation5], 4
      %s32 = int_to_ptr.vmem [resolvable:$true] %s31
      %37 = dma.hbm_to_vmem [thread:$0]  %s3, 2048, %s32, [#allocation6], 128, 128, 8
    $region17: #{tpu_custom_call.1} parent=1 // pred_fallthru
      _
    // Predicated region
    $region18: #{tpu_custom_call.1} parent=1 // pred_check
      _
    $region19: #{tpu_custom_call.1} parent=1 // pred_check_branch
      %39 = sbr.rel (0) target = $region21
    $region20: #{tpu_custom_call.1} parent=1 // pred_region
      %40 = dma.done [#allocation3], 64
    $region21: #{tpu_custom_call.1} parent=1 // pred_fallthru
      _
    // Predicated region
    $region22: #{tpu_custom_call.1} parent=1 // pred_check
      _
    $region23: #{tpu_custom_call.1} parent=1 // pred_check_branch
      %42 = sbr.rel (0) target = $region25
    $region24: #{tpu_custom_call.1} parent=1 // pred_region
      %43 = dma.done [#allocation6], 2048
    $region25: #{tpu_custom_call.1} parent=1 // pred_fallthru
      _
    %v44 = vld [vmem:[#allocation2] sm:$0xf]
    %v45 = vld [vmem:[#allocation5] sm:$0xff]
    %v46 = vld [vmem:[#allocation5 + $0x8] sm:$0xff]
    %v47 = vld [vmem:[#allocation5 + $0x10] sm:$0xff]
    %v48 = vld [vmem:[#allocation5 + $0x18] sm:$0xff]
    %v49 = vld [vmem:[#allocation5 + $0x20] sm:$0xff]
    %v50 = vld [vmem:[#allocation5 + $0x28] sm:$0xff]
    %v51 = vld [vmem:[#allocation5 + $0x30] sm:$0xff]
    %v52 = vld [vmem:[#allocation5 + $0x38] sm:$0xff]
    %v53 = vld [vmem:[#allocation5 + $0x40] sm:$0xff]
    %v54 = vld [vmem:[#allocation5 + $0x48] sm:$0xff]
    %v55 = vld [vmem:[#allocation5 + $0x50] sm:$0xff]
    %v56 = vld [vmem:[#allocation5 + $0x58] sm:$0xff]
    %v57 = vld [vmem:[#allocation5 + $0x60] sm:$0xff]
    %v58 = vld [vmem:[#allocation5 + $0x68] sm:$0xff]
    %v59 = vld [vmem:[#allocation5 + $0x70] sm:$0xff]
    %v60 = vld [vmem:[#allocation5 + $0x78] sm:$0xff]
    %v61 = vpack.c.bf16 %v44, %v44
    %v62 = vunpack.c.l.bf16 %v61
    %v63 = vsub.f32 %v44, %v62
    %64 = vmatprep.subr.mxu0 0.0
    %65 = vmatpush1.msra.mxu0 %v60
    %66 = vmatprep.subr.mxu0 0.0
    %67 = vmatpush1.msra.mxu0 %v59
    %68 = vmatprep.subr.mxu0 0.0
    %69 = vmatpush1.msra.mxu0 %v58
    %70 = vmatprep.subr.mxu0 0.0
    %71 = vmatpush1.msra.mxu0 %v57
    %72 = vmatprep.subr.mxu0 0.0
    %73 = vmatpush1.msra.mxu0 %v56
    %74 = vmatprep.subr.mxu0 0.0
    %75 = vmatpush1.msra.mxu0 %v55
    %76 = vmatprep.subr.mxu0 0.0
    %77 = vmatpush1.msra.mxu0 %v54
    %78 = vmatprep.subr.mxu0 0.0
    %79 = vmatpush1.msra.mxu0 %v53
    %80 = vmatprep.subr.mxu0 0.0
    %81 = vmatpush1.msra.mxu0 %v52
    %82 = vmatprep.subr.mxu0 0.0
    %83 = vmatpush1.msra.mxu0 %v51
    %84 = vmatprep.subr.mxu0 0.0
    %85 = vmatpush1.msra.mxu0 %v50
    %86 = vmatprep.subr.mxu0 0.0
    %87 = vmatpush1.msra.mxu0 %v49
    %88 = vmatprep.subr.mxu0 0.0
    %89 = vmatpush1.msra.mxu0 %v48
    %90 = vmatprep.subr.mxu0 0.0
    %91 = vmatpush1.msra.mxu0 %v47
    %92 = vmatprep.subr.mxu0 0.0
    %93 = vmatpush1.msra.mxu0 %v46
    %94 = vmatprep.subr.mxu0 0.0
    %95 = vmatpush1.msra.mxu0 %v45
    %96 = vmatprep.subr.mxu0 0.0
    %97 = vmatpush2.msra.mxu0 0.0
    %98 = vmatprep.subr.mxu0 0.0
    %99 = vmatpush2.msra.mxu0 0.0
    %100 = vmatprep.subr.mxu0 0.0
    %101 = vmatpush2.msra.mxu0 0.0
    %102 = vmatprep.subr.mxu0 0.0
    %103 = vmatpush2.msra.mxu0 0.0
    %104 = vmatprep.subr.mxu0 0.0
    %105 = vmatpush2.msra.mxu0 0.0
    %106 = vmatprep.subr.mxu0 0.0
    %107 = vmatpush2.msra.mxu0 0.0
    %108 = vmatprep.subr.mxu0 0.0
    %109 = vmatpush2.msra.mxu0 0.0
    %110 = vmatprep.subr.mxu0 0.0
    %111 = vmatpush2.msra.mxu0 0.0
    %112 = vmatprep.subr.mxu0 0.0
    %113 = vmatpush2.msra.mxu0 0.0
    %114 = vmatprep.subr.mxu0 0.0
    %115 = vmatpush2.msra.mxu0 0.0
    %116 = vmatprep.subr.mxu0 0.0
    %117 = vmatpush2.msra.mxu0 0.0
    %118 = vmatprep.subr.mxu0 0.0
    %119 = vmatpush2.msra.mxu0 0.0
    %120 = vmatprep.subr.mxu0 0.0
    %121 = vmatpush2.msra.mxu0 0.0
    %122 = vmatprep.subr.mxu0 0.0
    %123 = vmatpush2.msra.mxu0 0.0
    %124 = vmatprep.subr.mxu0 0.0
    %125 = vmatpush2.msra.mxu0 0.0
    %126 = vmatprep.subr.mxu0 0.0
    %127 = vmatpush2.msra.mxu0 0.0
    %128 = vmatprep.mubr.f32.mxu0 0.0
    %129 = vmatmul.mubr.f32.gmra.mxu0 %v63
    %v130 = vpop.f32.mrf.mxu0
    %v131 = vadd.f32 0.0, %v130
    %v132 = vpop.f32.mrf.mxu0
    %133 = vdwg.mxu0
    %134 = vmatprep.subr.mxu0 0.0
    %135 = vmatpush1.msra.mxu0 %v60
    %136 = vmatprep.subr.mxu0 0.0
    %137 = vmatpush1.msra.mxu0 %v59
    %138 = vmatprep.subr.mxu0 0.0
    %139 = vmatpush1.msra.mxu0 %v58
    %140 = vmatprep.subr.mxu0 0.0
    %141 = vmatpush1.msra.mxu0 %v57
    %142 = vmatprep.subr.mxu0 0.0
    %143 = vmatpush1.msra.mxu0 %v56
    %144 = vmatprep.subr.mxu0 0.0
    %145 = vmatpush1.msra.mxu0 %v55
    %146 = vmatprep.subr.mxu0 0.0
    %147 = vmatpush1.msra.mxu0 %v54
    %148 = vmatprep.subr.mxu0 0.0
    %149 = vmatpush1.msra.mxu0 %v53
    %150 = vmatprep.subr.mxu0 0.0
    %151 = vmatpush1.msra.mxu0 %v52
    %152 = vmatprep.subr.mxu0 0.0
    %153 = vmatpush1.msra.mxu0 %v51
    %154 = vmatprep.subr.mxu0 0.0
    %155 = vmatpush1.msra.mxu0 %v50
    %156 = vmatprep.subr.mxu0 0.0
    %157 = vmatpush1.msra.mxu0 %v49
    %158 = vmatprep.subr.mxu0 0.0
    %159 = vmatpush1.msra.mxu0 %v48
    %160 = vmatprep.subr.mxu0 0.0
    %161 = vmatpush1.msra.mxu0 %v47
    %162 = vmatprep.subr.mxu0 0.0
    %163 = vmatpush1.msra.mxu0 %v46
    %164 = vmatprep.subr.mxu0 0.0
    %165 = vmatpush1.msra.mxu0 %v45
    %166 = vmatprep.subr.mxu0 0.0
    %167 = vmatpush2.msra.mxu0 0.0
    %168 = vmatprep.subr.mxu0 0.0
    %169 = vmatpush2.msra.mxu0 0.0
    %170 = vmatprep.subr.mxu0 0.0
    %171 = vmatpush2.msra.mxu0 0.0
    %172 = vmatprep.subr.mxu0 0.0
    %173 = vmatpush2.msra.mxu0 0.0
    %174 = vmatprep.subr.mxu0 0.0
    %175 = vmatpush2.msra.mxu0 0.0
    %176 = vmatprep.subr.mxu0 0.0
    %177 = vmatpush2.msra.mxu0 0.0
    %178 = vmatprep.subr.mxu0 0.0
    %179 = vmatpush2.msra.mxu0 0.0
    %180 = vmatprep.subr.mxu0 0.0
    %181 = vmatpush2.msra.mxu0 0.0
    %182 = vmatprep.subr.mxu0 0.0
    %183 = vmatpush2.msra.mxu0 0.0
    %184 = vmatprep.subr.mxu0 0.0
    %185 = vmatpush2.msra.mxu0 0.0
    %186 = vmatprep.subr.mxu0 0.0
    %187 = vmatpush2.msra.mxu0 0.0
    %188 = vmatprep.subr.mxu0 0.0
    %189 = vmatpush2.msra.mxu0 0.0
    %190 = vmatprep.subr.mxu0 0.0
    %191 = vmatpush2.msra.mxu0 0.0
    %192 = vmatprep.subr.mxu0 0.0
    %193 = vmatpush2.msra.mxu0 0.0
    %194 = vmatprep.subr.mxu0 0.0
    %195 = vmatpush2.msra.mxu0 0.0
    %196 = vmatprep.subr.mxu0 0.0
    %197 = vmatpush2.msra.mxu0 0.0
    %198 = vmatprep.mubr.f32.mxu0 0.0
    %199 = vmatmul.mubr.f32.gmra.mxu0 %v62
    %v200 = vpop.f32.mrf.mxu0
    %v201 = vadd.f32 %v131, %v200
    %v202 = vpop.f32.mrf.mxu0
    %203 = vdwg.mxu0
    %v204 = vrcp.pop 32.0
    %v205 = vmul.f32 %v201, %v204
    %v206 = vsub.f32 %v44, %v205
    %v207 = vmul.f32 %v206, %v206
    %v208 = vpack.c.bf16 %v207, %v207
    %v209 = vunpack.c.l.bf16 %v208
    %v210 = vsub.f32 %v207, %v209
    %211 = vmatprep.subr.mxu0 0.0
    %212 = vmatpush1.msra.mxu0 %v60
    %213 = vmatprep.subr.mxu0 0.0
    %214 = vmatpush1.msra.mxu0 %v59
    %215 = vmatprep.subr.mxu0 0.0
    %216 = vmatpush1.msra.mxu0 %v58
    %217 = vmatprep.subr.mxu0 0.0
    %218 = vmatpush1.msra.mxu0 %v57
    %219 = vmatprep.subr.mxu0 0.0
    %220 = vmatpush1.msra.mxu0 %v56
    %221 = vmatprep.subr.mxu0 0.0
    %222 = vmatpush1.msra.mxu0 %v55
    %223 = vmatprep.subr.mxu0 0.0
    %224 = vmatpush1.msra.mxu0 %v54
    %225 = vmatprep.subr.mxu0 0.0
    %226 = vmatpush1.msra.mxu0 %v53
    %227 = vmatprep.subr.mxu0 0.0
    %228 = vmatpush1.msra.mxu0 %v52
    %229 = vmatprep.subr.mxu0 0.0
    %230 = vmatpush1.msra.mxu0 %v51
    %231 = vmatprep.subr.mxu0 0.0
    %232 = vmatpush1.msra.mxu0 %v50
    %233 = vmatprep.subr.mxu0 0.0
    %234 = vmatpush1.msra.mxu0 %v49
    %235 = vmatprep.subr.mxu0 0.0
    %236 = vmatpush1.msra.mxu0 %v48
    %237 = vmatprep.subr.mxu0 0.0
    %238 = vmatpush1.msra.mxu0 %v47
    %239 = vmatprep.subr.mxu0 0.0
    %240 = vmatpush1.msra.mxu0 %v46
    %241 = vmatprep.subr.mxu0 0.0
    %242 = vmatpush1.msra.mxu0 %v45
    %243 = vmatprep.subr.mxu0 0.0
    %244 = vmatpush2.msra.mxu0 0.0
    %245 = vmatprep.subr.mxu0 0.0
    %246 = vmatpush2.msra.mxu0 0.0
    %247 = vmatprep.subr.mxu0 0.0
    %248 = vmatpush2.msra.mxu0 0.0
    %249 = vmatprep.subr.mxu0 0.0
    %250 = vmatpush2.msra.mxu0 0.0
    %251 = vmatprep.subr.mxu0 0.0
    %252 = vmatpush2.msra.mxu0 0.0
    %253 = vmatprep.subr.mxu0 0.0
    %254 = vmatpush2.msra.mxu0 0.0
    %255 = vmatprep.subr.mxu0 0.0
    %256 = vmatpush2.msra.mxu0 0.0
    %257 = vmatprep.subr.mxu0 0.0
    %258 = vmatpush2.msra.mxu0 0.0
    %259 = vmatprep.subr.mxu0 0.0
    %260 = vmatpush2.msra.mxu0 0.0
    %261 = vmatprep.subr.mxu0 0.0
    %262 = vmatpush2.msra.mxu0 0.0
    %263 = vmatprep.subr.mxu0 0.0
    %264 = vmatpush2.msra.mxu0 0.0
    %265 = vmatprep.subr.mxu0 0.0
    %266 = vmatpush2.msra.mxu0 0.0
    %267 = vmatprep.subr.mxu0 0.0
    %268 = vmatpush2.msra.mxu0 0.0
    %269 = vmatprep.subr.mxu0 0.0
    %270 = vmatpush2.msra.mxu0 0.0
    %271 = vmatprep.subr.mxu0 0.0
    %272 = vmatpush2.msra.mxu0 0.0
    %273 = vmatprep.subr.mxu0 0.0
    %274 = vmatpush2.msra.mxu0 0.0
    %275 = vmatprep.mubr.f32.mxu0 0.0
    %276 = vmatmul.mubr.f32.gmra.mxu0 %v210
    %v277 = vpop.f32.mrf.mxu0
    %v278 = vadd.f32 0.0, %v277
    %v279 = vpop.f32.mrf.mxu0
    %280 = vdwg.mxu0
    %281 = vmatprep.subr.mxu0 0.0
    %282 = vmatpush1.msra.mxu0 %v60
    %283 = vmatprep.subr.mxu0 0.0
    %284 = vmatpush1.msra.mxu0 %v59
    %285 = vmatprep.subr.mxu0 0.0
    %286 = vmatpush1.msra.mxu0 %v58
    %287 = vmatprep.subr.mxu0 0.0
    %288 = vmatpush1.msra.mxu0 %v57
    %289 = vmatprep.subr.mxu0 0.0
    %290 = vmatpush1.msra.mxu0 %v56
    %291 = vmatprep.subr.mxu0 0.0
    %292 = vmatpush1.msra.mxu0 %v55
    %293 = vmatprep.subr.mxu0 0.0
    %294 = vmatpush1.msra.mxu0 %v54
    %295 = vmatprep.subr.mxu0 0.0
    %296 = vmatpush1.msra.mxu0 %v53
    %297 = vmatprep.subr.mxu0 0.0
    %298 = vmatpush1.msra.mxu0 %v52
    %299 = vmatprep.subr.mxu0 0.0
    %300 = vmatpush1.msra.mxu0 %v51
    %301 = vmatprep.subr.mxu0 0.0
    %302 = vmatpush1.msra.mxu0 %v50
    %303 = vmatprep.subr.mxu0 0.0
    %304 = vmatpush1.msra.mxu0 %v49
    %305 = vmatprep.subr.mxu0 0.0
    %306 = vmatpush1.msra.mxu0 %v48
    %307 = vmatprep.subr.mxu0 0.0
    %308 = vmatpush1.msra.mxu0 %v47
    %309 = vmatprep.subr.mxu0 0.0
    %310 = vmatpush1.msra.mxu0 %v46
    %311 = vmatprep.subr.mxu0 0.0
    %312 = vmatpush1.msra.mxu0 %v45
    %313 = vmatprep.subr.mxu0 0.0
    %314 = vmatpush2.msra.mxu0 0.0
    %315 = vmatprep.subr.mxu0 0.0
    %316 = vmatpush2.msra.mxu0 0.0
    %317 = vmatprep.subr.mxu0 0.0
    %318 = vmatpush2.msra.mxu0 0.0
    %319 = vmatprep.subr.mxu0 0.0
    %320 = vmatpush2.msra.mxu0 0.0
    %321 = vmatprep.subr.mxu0 0.0
    %322 = vmatpush2.msra.mxu0 0.0
    %323 = vmatprep.subr.mxu0 0.0
    %324 = vmatpush2.msra.mxu0 0.0
    %325 = vmatprep.subr.mxu0 0.0
    %326 = vmatpush2.msra.mxu0 0.0
    %327 = vmatprep.subr.mxu0 0.0
    %328 = vmatpush2.msra.mxu0 0.0
    %329 = vmatprep.subr.mxu0 0.0
    %330 = vmatpush2.msra.mxu0 0.0
    %331 = vmatprep.subr.mxu0 0.0
    %332 = vmatpush2.msra.mxu0 0.0
    %333 = vmatprep.subr.mxu0 0.0
    %334 = vmatpush2.msra.mxu0 0.0
    %335 = vmatprep.subr.mxu0 0.0
    %336 = vmatpush2.msra.mxu0 0.0
    %337 = vmatprep.subr.mxu0 0.0
    %338 = vmatpush2.msra.mxu0 0.0
    %339 = vmatprep.subr.mxu0 0.0
    %340 = vmatpush2.msra.mxu0 0.0
    %341 = vmatprep.subr.mxu0 0.0
    %342 = vmatpush2.msra.mxu0 0.0
    %343 = vmatprep.subr.mxu0 0.0
    %344 = vmatpush2.msra.mxu0 0.0
    %345 = vmatprep.mubr.f32.mxu0 0.0
    %346 = vmatmul.mubr.f32.gmra.mxu0 %v209
    %v347 = vpop.f32.mrf.mxu0
    %v348 = vadd.f32 %v278, %v347
    %v349 = vpop.f32.mrf.mxu0
    %350 = vdwg.mxu0
    %v351 = vrcp.pop 31.0
    %v352 = vmul.f32 %v348, %v351
    %v353 = vrsqrt.pop %v352
    %v354 = vmul.f32 %v352, %v353
    %vm355 = vcmp.eq.f32.partialorder %v352, inf
    %v356 = vsel %vm355, %v352, %v354
    %vm357 = vcmp.eq.f32.partialorder %v352, 0.0
    %v358 = vand.u32 %v352, 2147483648
    %v359 = vsel %vm357, %v358, %v356
    %v360 = vadd.f32 %v359, 1e-06
    %v361 = vrcp.pop %v360
    %v362 = vmul.f32 1.0, %v361
    %v363 = vmul.f32 %v206, %v362
    %v364 = vld [vmem:[%s1] sm:$0x1]
    %v366 = vlaneseq
    %v367 = vshrl.u32 %v366, 7
    %v368 = vsub.s32 0, %v367
    %v369 = vrot.slane %v364, %v368
    %v371 = vmul.f32 %v363, %v369
    %v372 = vld [vmem:[%s2] sm:$0x1]
    %v374 = vlaneseq
    %v375 = vshrl.u32 %v374, 7
    %v376 = vsub.s32 0, %v375
    %v377 = vrot.slane %v372, %v376
    %v379 = vadd.f32 %v371, %v377
    %380 = vst [vmem:[#allocation7] sm:$0xf] %v379
    // Predicated region
    $region26: #{tpu_custom_call.1} parent=1 // pred_check
      _
    $region27: #{tpu_custom_call.1} parent=1 // pred_check_branch
      %382 = sbr.rel (0) target = $region29
    $region28: #{tpu_custom_call.1} parent=1 // pred_region
      %s384 = ssub.s32 64, 64
      %385 = vsyncadd [#allocation4], %s384
      %s387 = sshll.u32 [#allocation7], 4
      %s388 = int_to_ptr.vmem [resolvable:$true] %s387
      %390 = dma.vmem_to_hbm [thread:$0]  %s388, 64, %s4, [#allocation4]
    $region29: #{tpu_custom_call.1} parent=1 // pred_fallthru
      _
    // Predicated region
    $region30: #{tpu_custom_call.1} parent=1 // pred_check
      _
    $region31: #{tpu_custom_call.1} parent=1 // pred_check_branch
      %392 = sbr.rel (0) target = $region33
    $region32: #{tpu_custom_call.1} parent=1 // pred_region
      %393 = dma.done [#allocation4], 64
    $region33: #{tpu_custom_call.1} parent=1 // pred_fallthru
      _
    %394 = vsyncpa [#allocation3], 1
    %395 = vsyncpa [#allocation6], 1
    %396 = vsyncpa [#allocation4], 1

</llo_original>
